<compile_context>
chip_gen: v6e
topology: v6e:2x2x1
jax: 0.10.0
libtpu: 0.0.40
codegen_flags: <defaults>
</compile_context>

<pallas_src>
import jax
import jax.numpy as jnp
from jax.experimental import pallas as pl
from jax.experimental.pallas import tpu as pltpu


def resblock_kernel(x_ref, w13_ref, b13_ref, w2_ref, gamma_ref, beta_ref, o_ref):
    hidden = w2_ref.shape[0]                       # static: H

    w13 = w13_ref[...]
    x = x_ref[...].astype(w13.dtype)               # no-op when x is already streamed in bf16

    # Fused fc1 + fc3: single pass of x through the MXU, f32 accumulation.
    # b13 residual half already contains b2 + b3.
    z = jnp.dot(x, w13, preferred_element_type=jnp.float32) + b13_ref[...].astype(jnp.float32)
    h = jnp.maximum(z[:, :hidden], 0.0)            # fc1 output + ReLU
    r = z[:, hidden:]                              # fc3(x) + b2 + b3 residual branch

    # fc2 (dropout is identity at inference), f32 accumulation.
    y = jnp.dot(h.astype(w2_ref.dtype), w2_ref[...], preferred_element_type=jnp.float32) + r

    # LayerNorm over last dim, eps = 1e-5 (biased variance, like F.layer_norm), all in f32.
    # Two-pass stats kept for numerics; one-pass sum/sumsq only if the LN tail shows up in
    # profiles (cancellation risk with bf16-fed f32).
    mean = jnp.mean(y, axis=-1, keepdims=True)
    centered = y - mean
    var = jnp.mean(centered * centered, axis=-1, keepdims=True)
    inv = jax.lax.rsqrt(var + 1e-5)
    out = centered * inv * gamma_ref[...].astype(jnp.float32) + beta_ref[...].astype(jnp.float32)

    o_ref[...] = out.astype(o_ref.dtype)


def fuse_params(p, compute_dtype=jnp.bfloat16):
    """Kernel parameter dict: fc1/fc3 weights fused along the output axis, b2 folded into
    the residual half of the fused bias, everything cast to the compute dtype here (not
    in-kernel) so the HBM-resident copies are already narrow."""
    w13 = jnp.concatenate([p["w1"], p["w3"]], axis=1)          # [D_in, H + D_out]
    b13 = jnp.concatenate([p["b1"], p["b2"] + p["b3"]], axis=1)  # [1, H + D_out]
    return dict(
        w13=w13.astype(compute_dtype),
        b13=b13.astype(compute_dtype),
        w2=p["w2"].astype(compute_dtype),
        gamma=p["gamma"].astype(compute_dtype),
        beta=p["beta"].astype(compute_dtype),
    )


def resblock_forward(x, fused, *, block_b=1024):
    """x: [B, input_dim]. fused: dict from fuse_params (weights stored as [in, out])."""
    B, d_in = x.shape
    H, d_out = fused["w2"].shape
    n13 = fused["w13"].shape[1]                    # H + d_out
    wdtype = fused["w13"].dtype

    # Stream x (and write out) in the compute dtype: halves the HBM-bound activation traffic.
    x = x.astype(wdtype)
    out_dtype = wdtype

    # Batch tile: multiple of 8 sublanes, no bigger than the rounded-up batch.
    tb = min(block_b, ((B + 7) // 8) * 8)
    tb = ((tb + 7) // 8) * 8
    grid = (pl.cdiv(B, tb),)                       # ragged last tile: Pallas masks OOB writes

    def const(shape):
        # Resident operands: block index never changes -> single-buffer them.
        return pl.BlockSpec(shape, lambda i: (0,) * len(shape),
                            pipeline_mode=pl.Buffered(buffer_count=1))

    # Explicit scoped-VMEM sizing: 2x x-tile + 2x out-tile (double-buffered streams),
    # 1x resident weights/biases/LN params, plus the f32/bf16 intermediates, with headroom.
    w_item = jnp.dtype(wdtype).itemsize
    o_item = jnp.dtype(out_dtype).itemsize
    weight_bytes = (d_in * n13 + n13 + H * d_out + 2 * d_out) * w_item
    stream_bytes = 2 * tb * d_in * w_item + 2 * tb * d_out * o_item
    interm_bytes = tb * n13 * 4 + tb * H * w_item + tb * d_out * 4
    vmem_needed = weight_bytes + stream_bytes + interm_bytes
    vmem_limit = int(min(max(int(1.5 * vmem_needed) + (2 << 20), 16 << 20), 100 << 20))

    flops = 2 * B * (d_in * n13 + H * d_out)
    bytes_accessed = B * d_in * w_item + B * d_out * o_item + weight_bytes

    return pl.pallas_call(
        resblock_kernel,
        out_shape=jax.ShapeDtypeStruct((B, d_out), out_dtype),
        grid=grid,
        in_specs=[
            pl.BlockSpec((tb, d_in), lambda i: (i, 0)),     # x: batch-tiled, double-buffered
            const((d_in, n13)), const((1, n13)),            # fused fc1|fc3 weight / bias
            const((H, d_out)),                              # fc2 weight (bias folded into b13)
            const((1, d_out)), const((1, d_out)),           # LN gamma / beta
        ],
        out_specs=pl.BlockSpec((tb, d_out), lambda i: (i, 0)),
        compiler_params=pltpu.CompilerParams(
            dimension_semantics=("parallel",),
            vmem_limit_bytes=vmem_limit),
        cost_estimate=pl.CostEstimate(flops=flops, transcendentals=B,
                                      bytes_accessed=bytes_accessed),
    )(x, fused["w13"], fused["b13"], fused["w2"], fused["gamma"], fused["beta"])


def init_params(key, input_dim, hidden_dim, output_dim, dtype=jnp.float32):
    """Deterministic init mimicking nn.Linear (uniform +-1/sqrt(fan_in)); LN weight=1, bias=0.
    Weights are stored as [in, out] (transposed from PyTorch's [out, in])."""
    k1, k2, k3, k4, k5, k6 = jax.random.split(key, 6)

    def linear(kw, kb, fan_in, fan_out):
        bound = 1.0 / jnp.sqrt(fan_in)
        w = jax.random.uniform(kw, (fan_in, fan_out), jnp.float32, -bound, bound).astype(dtype)
        b = jax.random.uniform(kb, (1, fan_out), jnp.float32, -bound, bound).astype(dtype)
        return w, b

    w1, b1 = linear(k1, k2, input_dim, hidden_dim)
    w2, b2 = linear(k3, k4, hidden_dim, output_dim)
    w3, b3 = linear(k5, k6, input_dim, output_dim)
    return dict(
        w1=w1, b1=b1, w2=w2, b2=b2, w3=w3, b3=b3,
        gamma=jnp.ones((1, output_dim), dtype),
        beta=jnp.zeros((1, output_dim), dtype),
    )


def resblock_ref(x, p):
    """Pure-JAX f32 reference (unfused) for correctness check."""
    h = jnp.maximum(x @ p["w1"] + p["b1"], 0.0)
    y = h @ p["w2"] + p["b2"] + x @ p["w3"] + p["b3"]
    mean = jnp.mean(y, axis=-1, keepdims=True)
    var = jnp.mean((y - mean) ** 2, axis=-1, keepdims=True)
    return (y - mean) * jax.lax.rsqrt(var + 1e-5) * p["gamma"] + p["beta"]


if __name__ == "__main__":
    key = jax.random.PRNGKey(0)
    kx, kp = jax.random.split(key)

    # Small but lane-dense shapes (feature dims multiples of 128). B=200 with tb=128 gives
    # a 2-step grid (exercises the ragged, unpadded last tile and >=2 tiles for v7x megacore).
    B, input_dim, hidden_dim, output_dim = 200, 128, 256, 128
    x = jax.random.normal(kx, (B, input_dim), jnp.float32)
    params = init_params(kp, input_dim, hidden_dim, output_dim)          # f32 master params
    fused = fuse_params(params, compute_dtype=jnp.bfloat16)              # bf16 kernel params

    out = resblock_forward(x, fused, block_b=128)
    out = jax.block_until_ready(out)

    ref = resblock_ref(x, params)                                        # f32 reference
    assert out.shape == (B, output_dim)
    assert out.dtype == jnp.bfloat16
    # bf16 weights/activations vs f32 reference -> widened tolerance (expected).
    assert jnp.allclose(out.astype(jnp.float32), ref, atol=5e-2, rtol=5e-2), "mismatch vs reference"

    print("KERNEL_OK")
</pallas_src>

<mosaic_0001>
module attributes {stable_mosaic.version = 11 : i64} {
  func.func @resblock_kernel(%arg0: i32, %arg1: memref<128x128xbf16, #tpu.memory_space<vmem>>, %arg2: memref<128x384xbf16, #tpu.memory_space<vmem>>, %arg3: memref<1x384xbf16, #tpu.memory_space<vmem>>, %arg4: memref<256x128xbf16, #tpu.memory_space<vmem>>, %arg5: memref<1x128xbf16, #tpu.memory_space<vmem>>, %arg6: memref<1x128xbf16, #tpu.memory_space<vmem>>, %arg7: memref<128x128xbf16, #tpu.memory_space<vmem>>) attributes {dimension_semantics = [#tpu.dimension_semantics<parallel>], iteration_bounds = array<i64: 2>, scalar_prefetch = 0 : i64, scratch_operands = 0 : i64, tpu.core_type = #tpu.core_type<tc>, window_params = [{transform_indices = @transform_0, window_bounds = array<i64: 128, 128>}, {pipeline_mode = #tpu.pipeline_mode<synchronous>, transform_indices = @transform_1, window_bounds = array<i64: 128, 384>}, {pipeline_mode = #tpu.pipeline_mode<synchronous>, transform_indices = @transform_2, window_bounds = array<i64: 1, 384>}, {pipeline_mode = #tpu.pipeline_mode<synchronous>, transform_indices = @transform_3, window_bounds = array<i64: 256, 128>}, {pipeline_mode = #tpu.pipeline_mode<synchronous>, transform_indices = @transform_4, window_bounds = array<i64: 1, 128>}, {pipeline_mode = #tpu.pipeline_mode<synchronous>, transform_indices = @transform_5, window_bounds = array<i64: 1, 128>}, {transform_indices = @transform_6, window_bounds = array<i64: 128, 128>}]} {
    %c0 = arith.constant 0 : index
    %c0_0 = arith.constant 0 : index
    %0 = vector.load %arg2[%c0, %c0_0] : memref<128x384xbf16, #tpu.memory_space<vmem>>, vector<128x384xbf16>
    %c0_1 = arith.constant 0 : index
    %c0_2 = arith.constant 0 : index
    %1 = vector.load %arg1[%c0_1, %c0_2] : memref<128x128xbf16, #tpu.memory_space<vmem>>, vector<128x128xbf16>
    %cst = arith.constant dense<0.000000e+00> : vector<128x384xf32>
    %2 = tpu.matmul %1, %0, %cst {dimension_numbers = #tpu.dot_dimension_numbers<[1], [0], [0], [1], [0, 0, 1, 1], [], []>} : vector<128x128xbf16>, vector<128x384xbf16>, vector<128x384xf32> -> vector<128x384xf32>
    %c0_3 = arith.constant 0 : index
    %c0_4 = arith.constant 0 : index
    %3 = vector.load %arg3[%c0_3, %c0_4] : memref<1x384xbf16, #tpu.memory_space<vmem>>, vector<1x384xbf16>
    %4 = arith.extf %3 : vector<1x384xbf16> to vector<1x384xf32>
    %5 = vector.broadcast %4 : vector<1x384xf32> to vector<128x384xf32>
    %6 = arith.addf %2, %5 : vector<128x384xf32>
    %7 = vector.extract_strided_slice %6 {offsets = [0, 0], sizes = [128, 256], strides = [1, 1]} : vector<128x384xf32> to vector<128x256xf32>
    %cst_5 = arith.constant 0.000000e+00 : f32
    %8 = vector.broadcast %cst_5 : f32 to vector<128x256xf32>
    %9 = arith.maximumf %7, %8 : vector<128x256xf32>
    %10 = vector.extract_strided_slice %6 {offsets = [0, 256], sizes = [128, 128], strides = [1, 1]} : vector<128x384xf32> to vector<128x128xf32>
    %11 = arith.truncf %9 : vector<128x256xf32> to vector<128x256xbf16>
    %c0_6 = arith.constant 0 : index
    %c0_7 = arith.constant 0 : index
    %12 = vector.load %arg4[%c0_6, %c0_7] : memref<256x128xbf16, #tpu.memory_space<vmem>>, vector<256x128xbf16>
    %cst_8 = arith.constant dense<0.000000e+00> : vector<128x128xf32>
    %13 = tpu.matmul %11, %12, %cst_8 {dimension_numbers = #tpu.dot_dimension_numbers<[1], [0], [0], [1], [0, 0, 1, 1], [], []>} : vector<128x256xbf16>, vector<256x128xbf16>, vector<128x128xf32> -> vector<128x128xf32>
    %14 = arith.addf %13, %10 : vector<128x128xf32>
    %cst_9 = arith.constant dense<0.000000e+00> : vector<128xf32>
    %15 = vector.multi_reduction <add>, %14, %cst_9 [1] : vector<128x128xf32> to vector<128xf32>
    %16 = vector.shape_cast %15 : vector<128xf32> to vector<128x1xf32>
    %cst_10 = arith.constant 1.280000e+02 : f32
    %17 = vector.broadcast %cst_10 : f32 to vector<128x1xf32>
    %18 = arith.divf %16, %17 : vector<128x1xf32>
    %19 = vector.broadcast %18 : vector<128x1xf32> to vector<128x128xf32>
    %20 = arith.subf %14, %19 : vector<128x128xf32>
    %21 = arith.mulf %20, %20 : vector<128x128xf32>
    %cst_11 = arith.constant dense<0.000000e+00> : vector<128xf32>
    %22 = vector.multi_reduction <add>, %21, %cst_11 [1] : vector<128x128xf32> to vector<128xf32>
    %23 = vector.shape_cast %22 : vector<128xf32> to vector<128x1xf32>
    %cst_12 = arith.constant 1.280000e+02 : f32
    %24 = vector.broadcast %cst_12 : f32 to vector<128x1xf32>
    %25 = arith.divf %23, %24 : vector<128x1xf32>
    %cst_13 = arith.constant 9.99999974E-6 : f32
    %26 = vector.broadcast %cst_13 : f32 to vector<128x1xf32>
    %27 = arith.addf %25, %26 : vector<128x1xf32>
    %28 = math.rsqrt %27 : vector<128x1xf32>
    %29 = vector.broadcast %28 : vector<128x1xf32> to vector<128x128xf32>
    %30 = arith.mulf %20, %29 : vector<128x128xf32>
    %c0_14 = arith.constant 0 : index
    %c0_15 = arith.constant 0 : index
    %31 = vector.load %arg5[%c0_14, %c0_15] : memref<1x128xbf16, #tpu.memory_space<vmem>>, vector<1x128xbf16>
    %32 = arith.extf %31 : vector<1x128xbf16> to vector<1x128xf32>
    %33 = vector.broadcast %32 : vector<1x128xf32> to vector<128x128xf32>
    %34 = arith.mulf %30, %33 : vector<128x128xf32>
    %c0_16 = arith.constant 0 : index
    %c0_17 = arith.constant 0 : index
    %35 = vector.load %arg6[%c0_16, %c0_17] : memref<1x128xbf16, #tpu.memory_space<vmem>>, vector<1x128xbf16>
    %36 = arith.extf %35 : vector<1x128xbf16> to vector<1x128xf32>
    %37 = vector.broadcast %36 : vector<1x128xf32> to vector<128x128xf32>
    %38 = arith.addf %34, %37 : vector<128x128xf32>
    %39 = arith.truncf %38 : vector<128x128xf32> to vector<128x128xbf16>
    %c0_18 = arith.constant 0 : index
    %c0_19 = arith.constant 0 : index
    %40 = vector.load %arg7[%c0_18, %c0_19] : memref<128x128xbf16, #tpu.memory_space<vmem>>, vector<128x128xbf16>
    tpu.vector_store %arg7[%c0_18, %c0_19], %39 {strides = array<i32>} : memref<128x128xbf16, #tpu.memory_space<vmem>>, vector<128x128xbf16>,
    return
  }
  func.func @transform_0(%arg0: i32) -> (i32, i32) {
    %c0_i32 = arith.constant 0 : i32
    %c0_i32_0 = arith.constant 0 : i32
    return %arg0, %c0_i32 : i32, i32
  }
  func.func @transform_1(%arg0: i32) -> (i32, i32) {
    %c0_i32 = arith.constant 0 : i32
    %c0_i32_0 = arith.constant 0 : i32
    %c0_i32_1 = arith.constant 0 : i32
    return %c0_i32, %c0_i32_0 : i32, i32
  }
  func.func @transform_2(%arg0: i32) -> (i32, i32) {
    %c0_i32 = arith.constant 0 : i32
    %c0_i32_0 = arith.constant 0 : i32
    %c0_i32_1 = arith.constant 0 : i32
    return %c0_i32, %c0_i32_0 : i32, i32
  }
  func.func @transform_3(%arg0: i32) -> (i32, i32) {
    %c0_i32 = arith.constant 0 : i32
    %c0_i32_0 = arith.constant 0 : i32
    %c0_i32_1 = arith.constant 0 : i32
    return %c0_i32, %c0_i32_0 : i32, i32
  }
  func.func @transform_4(%arg0: i32) -> (i32, i32) {
    %c0_i32 = arith.constant 0 : i32
    %c0_i32_0 = arith.constant 0 : i32
    %c0_i32_1 = arith.constant 0 : i32
    return %c0_i32, %c0_i32_0 : i32, i32
  }
  func.func @transform_5(%arg0: i32) -> (i32, i32) {
    %c0_i32 = arith.constant 0 : i32
    %c0_i32_0 = arith.constant 0 : i32
    %c0_i32_1 = arith.constant 0 : i32
    return %c0_i32, %c0_i32_0 : i32, i32
  }
  func.func @transform_6(%arg0: i32) -> (i32, i32) {
    %c0_i32 = arith.constant 0 : i32
    %c0_i32_0 = arith.constant 0 : i32
    return %arg0, %c0_i32 : i32, i32
  }
}

</mosaic_0001>

<llo_original>
// kernel: tpu_custom_call.1
$region0: #{tpu_custom_call.1}
  #allocation0 [shape = 'u32[]', space=smem, size = 0x4, offset = 0x4, fixed_abs, tag = 'smem constant byte address 0x4 - core index']
  #allocation1 [shape = 'u32[144,128]{1,0:T(1,128)}', space=vmem, size = 0x12000, scoped, tag = 'internal scratch']
  %s0 = inlined_call_operand.hbm [shape: bf16[200,128], index: 0, kind: input, shape index: {}]
  %s1 = inlined_call_operand.hbm [shape: bf16[128,384], index: 1, kind: input, shape index: {}]
  %s2 = inlined_call_operand.vmem [shape: bf16[1,384], index: 2, kind: input, shape index: {}]
  %s3 = inlined_call_operand.hbm [shape: bf16[256,128], index: 3, kind: input, shape index: {}]
  %s4 = inlined_call_operand.vmem [shape: bf16[1,128], index: 4, kind: input, shape index: {}]
  %s5 = inlined_call_operand.vmem [shape: bf16[1,128], index: 5, kind: input, shape index: {}]
  %s6 = inlined_call_operand.hbm [shape: bf16[200,128], index: 6, kind: output, shape index: {}]
  %s7 = sld [smem:[#allocation0]]
  $region69: #{tpu_custom_call.1} parent=0
    _
  %s9 = ssub.s32 1, %s7
  %s10 = scalar_select 0, %s9, %s7
  $region1: #{tpu_custom_call.1} parent=0
    #allocation2 [shape = 'u8[65536]{0}', space=vmem, size = 0x10000, scoped, tag = 'input window, operand 0']
    #allocation3 [shape = 's32[2]{0}', space=sflag, size = 0x8, scoped, tag = 'scoped memory for tpu_custom_call.1']
    #allocation4 [shape = 's32[2]{0}', space=sflag, size = 0x8, scoped, tag = 'scoped memory for tpu_custom_call.1']
    #allocation5 [shape = 'u8[98304]{0}', space=vmem, size = 0x18000, scoped, tag = 'input window, operand 1, single buffered']
    #allocation6 [shape = 's32[1]{0}', space=sflag, size = 0x4, scoped, tag = 'scoped memory for tpu_custom_call.1']
    #allocation7 [shape = 'u8[65536]{0}', space=vmem, size = 0x10000, scoped, tag = 'input window, operand 3, single buffered']
    #allocation8 [shape = 'u8[65536]{0}', space=vmem, size = 0x10000, scoped, tag = 'output window, operand 0']
    %11 = vsyncpa [#allocation3], 0
    %s12 = scalar_lea.sflag [#allocation3], 1
    %13 = vsyncpa %s12, 0
    %14 = vsyncpa [#allocation6], 0
    %15 = vsyncpa [#allocation4], 0
    %s16 = scalar_lea.sflag [#allocation4], 1
    %17 = vsyncpa %s16, 0
    loop: start=0, step=1, limit=4
    $region2: #{tpu_custom_call.1} parent=1 // loop_pre_header
      _
    $region3: #{tpu_custom_call.1} parent=1 // loop_header
      %s19 = sphi 0, %s23
      %p20 = scmp.ge.s32.totalorder %s19, 4
      %s29 = sphi 0, %s31
      %s32 = sphi 0, %s29
      %s33 = sphi 0, %s32
      %s49 = sphi 0, %s33
      %s53 = sphi 0, %s53
      %s55 = sphi 0, %s53
      %s56 = sphi 0, %s55
      %s70 = sphi 0, %s56
      %s74 = sphi 0, %s74
      %s76 = sphi 0, %s74
      %s77 = sphi 0, %s76
      %s91 = sphi 0, %s77
      %s95 = sphi 0, %s95
      %s97 = sphi 0, %s95
      %s98 = sphi 0, %s97
      %s112 = sphi 0, %s98
      %s116 = sphi 0, %s116
      %s118 = sphi 0, %s116
      %s119 = sphi 0, %s118
      %s133 = sphi 0, %s119
      %s137 = sphi 0, %s137
      %s139 = sphi 0, %s137
      %s140 = sphi 0, %s139
      %s154 = sphi 0, %s140
      %s160 = sphi 0, %s162
      %s163 = sphi 0, %s160
      %s164 = sphi 0, %s163
      %s180 = sphi 0, %s164
    $region4: #{tpu_custom_call.1} parent=1 // loop_header_branch
      %22 = sbr.rel (%p20) target = $region8
    $region5: #{tpu_custom_call.1} parent=1 // loop_body
      %s24 = ssub.s32 %s19, 1
      %s25 = ssub.s32 %s19, 2
      %s26 = sadd.s32 %s19, 1
      %s27 = ssub.s32 %s19, %s26
      %p28 = scmp.eq.s32.totalorder %s27, 0
      %s30 = sadd.s32 %s29, 1
      %s31 = scalar_select %p28, %s29, %s30
      %p34 = pneg %p28
      %p35 = scmp.eq.s32.totalorder %s19, 1
      %p36 = por %p34, %p35
      %p37 = scmp.ne.s32.totalorder %s29, %s32
      %p38 = scmp.eq.s32.totalorder %s19, 0
      %p39 = por %p37, %p38
      %p40 = scmp.ne.s32.totalorder %s29, %s32
      %p41 = scmp.eq.s32.totalorder %s24, 1
      %p42 = por %p40, %p41
      %p43 = scmp.ne.s32.totalorder %s32, %s33
      %p44 = scmp.eq.s32.totalorder %s24, 0
      %p45 = por %p43, %p44
      %p46 = scmp.ne.s32.totalorder %s32, %s33
      %p47 = scmp.eq.s32.totalorder %s25, 1
      %p48 = por %p46, %p47
      %p50 = scmp.ne.s32.totalorder %s33, %s49
      %p51 = scmp.eq.s32.totalorder %s25, 0
      %p52 = por %p50, %p51
      %s54 = sadd.s32 %s53, 1
      %p57 = scmp.eq.s32.totalorder %s19, 1
      %p58 = scmp.ne.s32.totalorder %s53, %s55
      %p59 = scmp.eq.s32.totalorder %s19, 0
      %p60 = por %p58, %p59
      %p61 = scmp.ne.s32.totalorder %s53, %s55
      %p62 = scmp.eq.s32.totalorder %s24, 1
      %p63 = por %p61, %p62
      %p64 = scmp.ne.s32.totalorder %s55, %s56
      %p65 = scmp.eq.s32.totalorder %s24, 0
      %p66 = por %p64, %p65
      %p67 = scmp.ne.s32.totalorder %s55, %s56
      %p68 = scmp.eq.s32.totalorder %s25, 1
      %p69 = por %p67, %p68
      %p71 = scmp.ne.s32.totalorder %s56, %s70
      %p72 = scmp.eq.s32.totalorder %s25, 0
      %p73 = por %p71, %p72
      %s75 = sadd.s32 %s74, 1
      %p78 = scmp.eq.s32.totalorder %s19, 1
      %p79 = scmp.ne.s32.totalorder %s74, %s76
      %p80 = scmp.eq.s32.totalorder %s19, 0
      %p81 = por %p79, %p80
      %p82 = scmp.ne.s32.totalorder %s74, %s76
      %p83 = scmp.eq.s32.totalorder %s24, 1
      %p84 = por %p82, %p83
      %p85 = scmp.ne.s32.totalorder %s76, %s77
      %p86 = scmp.eq.s32.totalorder %s24, 0
      %p87 = por %p85, %p86
      %p88 = scmp.ne.s32.totalorder %s76, %s77
      %p89 = scmp.eq.s32.totalorder %s25, 1
      %p90 = por %p88, %p89
      %p92 = scmp.ne.s32.totalorder %s77, %s91
      %p93 = scmp.eq.s32.totalorder %s25, 0
      %p94 = por %p92, %p93
      %s96 = sadd.s32 %s95, 1
      %p99 = scmp.eq.s32.totalorder %s19, 1
      %p100 = scmp.ne.s32.totalorder %s95, %s97
      %p101 = scmp.eq.s32.totalorder %s19, 0
      %p102 = por %p100, %p101
      %p103 = scmp.ne.s32.totalorder %s95, %s97
      %p104 = scmp.eq.s32.totalorder %s24, 1
      %p105 = por %p103, %p104
      %p106 = scmp.ne.s32.totalorder %s97, %s98
      %p107 = scmp.eq.s32.totalorder %s24, 0
      %p108 = por %p106, %p107
      %p109 = scmp.ne.s32.totalorder %s97, %s98
      %p110 = scmp.eq.s32.totalorder %s25, 1
      %p111 = por %p109, %p110
      %p113 = scmp.ne.s32.totalorder %s98, %s112
      %p114 = scmp.eq.s32.totalorder %s25, 0
      %p115 = por %p113, %p114
      %s117 = sadd.s32 %s116, 1
      %p120 = scmp.eq.s32.totalorder %s19, 1
      %p121 = scmp.ne.s32.totalorder %s116, %s118
      %p122 = scmp.eq.s32.totalorder %s19, 0
      %p123 = por %p121, %p122
      %p124 = scmp.ne.s32.totalorder %s116, %s118
      %p125 = scmp.eq.s32.totalorder %s24, 1
      %p126 = por %p124, %p125
      %p127 = scmp.ne.s32.totalorder %s118, %s119
      %p128 = scmp.eq.s32.totalorder %s24, 0
      %p129 = por %p127, %p128
      %p130 = scmp.ne.s32.totalorder %s118, %s119
      %p131 = scmp.eq.s32.totalorder %s25, 1
      %p132 = por %p130, %p131
      %p134 = scmp.ne.s32.totalorder %s119, %s133
      %p135 = scmp.eq.s32.totalorder %s25, 0
      %p136 = por %p134, %p135
      %s138 = sadd.s32 %s137, 1
      %p141 = scmp.eq.s32.totalorder %s19, 1
      %p142 = scmp.ne.s32.totalorder %s137, %s139
      %p143 = scmp.eq.s32.totalorder %s19, 0
      %p144 = por %p142, %p143
      %p145 = scmp.ne.s32.totalorder %s137, %s139
      %p146 = scmp.eq.s32.totalorder %s24, 1
      %p147 = por %p145, %p146
      %p148 = scmp.ne.s32.totalorder %s139, %s140
      %p149 = scmp.eq.s32.totalorder %s24, 0
      %p150 = por %p148, %p149
      %p151 = scmp.ne.s32.totalorder %s139, %s140
      %p152 = scmp.eq.s32.totalorder %s25, 1
      %p153 = por %p151, %p152
      %p155 = scmp.ne.s32.totalorder %s140, %s154
      %p156 = scmp.eq.s32.totalorder %s25, 0
      %p157 = por %p155, %p156
      %s158 = ssub.s32 %s19, %s26
      %p159 = scmp.eq.s32.totalorder %s158, 0
      %s161 = sadd.s32 %s160, 1
      %s162 = scalar_select %p159, %s160, %s161
      %p165 = pneg %p159
      %p166 = scmp.eq.s32.totalorder %s19, 1
      %p167 = por %p165, %p166
      %p168 = scmp.ne.s32.totalorder %s160, %s163
      %p169 = scmp.eq.s32.totalorder %s19, 0
      %p170 = por %p168, %p169
      %p171 = scmp.ne.s32.totalorder %s160, %s163
      %p172 = scmp.eq.s32.totalorder %s24, 1
      %p173 = por %p171, %p172
      %p174 = scmp.ne.s32.totalorder %s163, %s164
      %p175 = scmp.eq.s32.totalorder %s24, 0
      %p176 = por %p174, %p175
      %p177 = scmp.ne.s32.totalorder %s163, %s164
      %p178 = scmp.eq.s32.totalorder %s25, 1
      %p179 = por %p177, %p178
      %p181 = scmp.ne.s32.totalorder %s164, %s180
      %p182 = scmp.eq.s32.totalorder %s25, 0
      %p183 = por %p181, %p182
      %p184 = scmp.le.s32.totalorder 1, %s19
      %p185 = scmp.lt.s32.totalorder %s19, 3
      %p186 = pnand %p184, %p185
      %p187 = pneg %p186
      // Predicated region
      $region9: #{tpu_custom_call.1} parent=5 // pred_check
        _
      $region10: #{tpu_custom_call.1} parent=5 // pred_check_branch
        %189 = sbr.rel (%p186) target = $region12
      $region11: #{tpu_custom_call.1} parent=5 // pred_region
        %s190 = ssub.s32 %s19, 1
        // Predicated region
        $region13: #{tpu_custom_call.1} parent=11 // pred_check
          %p191 = pneg %p66
        $region14: #{tpu_custom_call.1} parent=11 // pred_check_branch
          %193 = sbr.rel (%p191) target = $region16
        $region15: #{tpu_custom_call.1} parent=11 // pred_region
          %s195 = ssub.s32 3072, 3072
          %196 = vsyncadd [#allocation6], %s195
          %s197 = sshll.u32 [#allocation5], 4
          %s198 = int_to_ptr.vmem [resolvable:$true] %s197
          %203 = dma.hbm_to_vmem [thread:$0]  %s1, 3072, %s198, [#allocation6], 192, 192, 12
        $region16: #{tpu_custom_call.1} parent=11 // pred_fallthru
          _
        // Predicated region
        $region17: #{tpu_custom_call.1} parent=11 // pred_check
          %p204 = pneg %p87
        $region18: #{tpu_custom_call.1} parent=11 // pred_check_branch
          %206 = sbr.rel (%p204) target = $region20
        $region19: #{tpu_custom_call.1} parent=11 // pred_region
          _
        $region20: #{tpu_custom_call.1} parent=11 // pred_fallthru
          _
        // Predicated region
        $region21: #{tpu_custom_call.1} parent=11 // pred_check
          %p207 = pneg %p108
        $region22: #{tpu_custom_call.1} parent=11 // pred_check_branch
          %209 = sbr.rel (%p207) target = $region24
        $region23: #{tpu_custom_call.1} parent=11 // pred_region
          %s211 = ssub.s32 2048, 2048
          %212 = vsyncadd [#allocation6], %s211
          %s213 = sshll.u32 [#allocation7], 4
          %s214 = int_to_ptr.vmem [resolvable:$true] %s213
          %219 = dma.hbm_to_vmem [thread:$0]  %s3, 2048, %s214, [#allocation6], 64, 64, 4
        $region24: #{tpu_custom_call.1} parent=11 // pred_fallthru
          _
        // Predicated region
        $region25: #{tpu_custom_call.1} parent=11 // pred_check
          %p220 = pneg %p129
        $region26: #{tpu_custom_call.1} parent=11 // pred_check_branch
          %222 = sbr.rel (%p220) target = $region28
        $region27: #{tpu_custom_call.1} parent=11 // pred_region
          _
        $region28: #{tpu_custom_call.1} parent=11 // pred_fallthru
          _
        // Predicated region
        $region29: #{tpu_custom_call.1} parent=11 // pred_check
          %p223 = pneg %p150
        $region30: #{tpu_custom_call.1} parent=11 // pred_check_branch
          %225 = sbr.rel (%p223) target = $region32
        $region31: #{tpu_custom_call.1} parent=11 // pred_region
          _
        $region32: #{tpu_custom_call.1} parent=11 // pred_fallthru
          _
      $region12: #{tpu_custom_call.1} parent=5 // pred_fallthru
        _
      %p226 = scmp.lt.s32.totalorder %s19, 2
      // Predicated region
      $region33: #{tpu_custom_call.1} parent=5 // pred_check
        %p227 = pneg %p226
      $region34: #{tpu_custom_call.1} parent=5 // pred_check_branch
        %229 = sbr.rel (%p227) target = $region36
      $region35: #{tpu_custom_call.1} parent=5 // pred_region
        // Predicated region
        $region37: #{tpu_custom_call.1} parent=35 // pred_check
          %p230 = pneg %p39
        $region38: #{tpu_custom_call.1} parent=35 // pred_check_branch
          %232 = sbr.rel (%p230) target = $region40
        $region39: #{tpu_custom_call.1} parent=35 // pred_region
          %s233 = sand.u32 %s29, 1
          %s234 = scalar_lea.sflag [#allocation3], %s233
          %s235 = sand.u32 %s29, 1
          %s236 = smul.addr %s235, 64
          %s237 = scalar_lea.vmem [#allocation2], %s236
          %s238 = smul.u32 16, %s19
          %s239 = ssub.s32 25, %s238
          %p240 = scmp.lt.s32.totalorder %s239, 16
          %s241 = scalar_select %p240, %s239, 16
          %s242 = smul.u32 64, %s241
          %s244 = ssub.s32 1024, %s242
          %245 = vsyncadd %s234, %s244
          %p246 = scmp.ne.s32.totalorder 0, %s242
          %s247 = smul.addr %s238, 64
          %s248 = scalar_lea.hbm %s0, %s247
          %s249 = smul.u32 4, %s241
          %s250 = sshll.u32 %s237, 4
          %s251 = int_to_ptr.vmem [resolvable:$true] %s250
          %s252 = sshll.u32 %s249, 4
          %256 = dma.hbm_to_vmem [thread:$0]  (%p246), %s248, %s252, %s251, %s234, 64, 64, 4
        $region40: #{tpu_custom_call.1} parent=35 // pred_fallthru
          _
      $region36: #{tpu_custom_call.1} parent=5 // pred_fallthru
        _
      %p257 = scmp.le.s32.totalorder 1, %s19
      %p258 = scmp.lt.s32.totalorder %s19, 3
      %p259 = pnand %p257, %p258
      %p260 = pneg %p259
      // Predicated region
      $region41: #{tpu_custom_call.1} parent=5 // pred_check
        _
      $region42: #{tpu_custom_call.1} parent=5 // pred_check_branch
        %262 = sbr.rel (%p259) target = $region44
      $region43: #{tpu_custom_call.1} parent=5 // pred_region
        %s263 = ssub.s32 %s19, 1
        %s264 = sand.u32 %s32, 1
        %s265 = scalar_lea.sflag [#allocation3], %s264
        %s266 = sand.u32 %s32, 1
        %s267 = smul.addr %s266, 64
        %s268 = scalar_lea.vmem [#allocation2], %s267
        // Predicated region
        $region45: #{tpu_custom_call.1} parent=43 // pred_check
          %p269 = pneg %p45
        $region46: #{tpu_custom_call.1} parent=43 // pred_check_branch
          %271 = sbr.rel (%p269) target = $region48
        $region47: #{tpu_custom_call.1} parent=43 // pred_region
          %272 = dma.done %s265, 1024
        $region48: #{tpu_custom_call.1} parent=43 // pred_fallthru
          _
        // Predicated region
        $region49: #{tpu_custom_call.1} parent=43 // pred_check
          %p273 = pneg %p66
        $region50: #{tpu_custom_call.1} parent=43 // pred_check_branch
          %275 = sbr.rel (%p273) target = $region52
        $region51: #{tpu_custom_call.1} parent=43 // pred_region
          %276 = dma.done [#allocation6], 3072
        $region52: #{tpu_custom_call.1} parent=43 // pred_fallthru
          _
        // Predicated region
        $region53: #{tpu_custom_call.1} parent=43 // pred_check
          %p277 = pneg %p108
        $region54: #{tpu_custom_call.1} parent=43 // pred_check_branch
          %279 = sbr.rel (%p277) target = $region56
        $region55: #{tpu_custom_call.1} parent=43 // pred_region
          %280 = dma.done [#allocation6], 2048
        $region56: #{tpu_custom_call.1} parent=43 // pred_fallthru
          _
        %s281 = sand.u32 %s32, 1
        %s282 = scalar_lea.sflag [#allocation3], %s281
        %s283 = sand.u32 %s32, 1
        %s284 = smul.addr %s283, 64
        %s285 = scalar_lea.vmem [#allocation2], %s284
        %p286 = pneg %p45
        %p287 = pneg %p42
        %p288 = pneg %p66
        %p289 = pneg %p63
        %p290 = pneg %p87
        %p291 = pneg %p84
        %p292 = pneg %p108
        %p293 = pneg %p105
        %p294 = pneg %p129
        %p295 = pneg %p126
        %p296 = pneg %p150
        %p297 = pneg %p147
        %p298 = pneg %p176
        %p299 = pneg %p173
        %s300 = sand.u32 %s163, 1
        %s301 = scalar_lea.sflag [#allocation4], %s300
        %s302 = sand.u32 %s163, 1
        %s303 = smul.addr %s302, 64
        %s304 = scalar_lea.vmem [#allocation8], %s303
        %s305 = smul.u32 16, %s24
        %s306 = ssub.s32 25, %s305
        %p307 = scmp.lt.s32.totalorder %s306, 16
        %s308 = scalar_select %p307, %s306, 16
        %s309 = smul.u32 64, %s308
        %s310 = smul.u32 16, %s24
        %s311 = ssub.s32 25, %s310
        %p312 = scmp.lt.s32.totalorder %s311, 16
        %s313 = scalar_select %p312, %s311, 16
        %s314 = smul.u32 64, %s313
        %v316 = vld [vmem:[#allocation5] sm:$0xff]
        %v317 = vld [vmem:[#allocation5 + $0x8] sm:$0xf]
        %v318 = vld [vmem:[#allocation5 + $0xc] sm:$0xff]
        %v319 = vld [vmem:[#allocation5 + $0x14] sm:$0xf]
        %v320 = vld [vmem:[#allocation5 + $0x18] sm:$0xff]
        %v321 = vld [vmem:[#allocation5 + $0x20] sm:$0xf]
        %v322 = vld [vmem:[#allocation5 + $0x24] sm:$0xff]
        %v323 = vld [vmem:[#allocation5 + $0x2c] sm:$0xf]
        %v324 = vld [vmem:[#allocation5 + $0x30] sm:$0xff]
        %v325 = vld [vmem:[#allocation5 + $0x38] sm:$0xf]
        %v326 = vld [vmem:[#allocation5 + $0x3c] sm:$0xff]
        %v327 = vld [vmem:[#allocation5 + $0x44] sm:$0xf]
        %v328 = vld [vmem:[#allocation5 + $0x48] sm:$0xff]
        %v329 = vld [vmem:[#allocation5 + $0x50] sm:$0xf]
        %v330 = vld [vmem:[#allocation5 + $0x54] sm:$0xff]
        %v331 = vld [vmem:[#allocation5 + $0x5c] sm:$0xf]
        %v332 = vld [vmem:[#allocation5 + $0x60] sm:$0xff]
        %v333 = vld [vmem:[#allocation5 + $0x68] sm:$0xf]
        %v334 = vld [vmem:[#allocation5 + $0x6c] sm:$0xff]
        %v335 = vld [vmem:[#allocation5 + $0x74] sm:$0xf]
        %v336 = vld [vmem:[#allocation5 + $0x78] sm:$0xff]
        %v337 = vld [vmem:[#allocation5 + $0x80] sm:$0xf]
        %v338 = vld [vmem:[#allocation5 + $0x84] sm:$0xff]
        %v339 = vld [vmem:[#allocation5 + $0x8c] sm:$0xf]
        %v340 = vld [vmem:[#allocation5 + $0x90] sm:$0xff]
        %v341 = vld [vmem:[#allocation5 + $0x98] sm:$0xf]
        %v342 = vld [vmem:[#allocation5 + $0x9c] sm:$0xff]
        %v343 = vld [vmem:[#allocation5 + $0xa4] sm:$0xf]
        %v344 = vld [vmem:[#allocation5 + $0xa8] sm:$0xff]
        %v345 = vld [vmem:[#allocation5 + $0xb0] sm:$0xf]
        %v346 = vld [vmem:[#allocation5 + $0xb4] sm:$0xff]
        %v347 = vld [vmem:[#allocation5 + $0xbc] sm:$0xf]
        %v348 = vld [vmem:[%s268] sm:$0xf]
        %v349 = vld [vmem:[%s268 + $0x4] sm:$0xf]
        %v350 = vld [vmem:[%s268 + $0x8] sm:$0xf]
        %v351 = vld [vmem:[%s268 + $0xc] sm:$0xf]
        %v352 = vld [vmem:[%s268 + $0x10] sm:$0xf]
        %v353 = vld [vmem:[%s268 + $0x14] sm:$0xf]
        %v354 = vld [vmem:[%s268 + $0x18] sm:$0xf]
        %v355 = vld [vmem:[%s268 + $0x1c] sm:$0xf]
        %v356 = vld [vmem:[%s268 + $0x20] sm:$0xf]
        %v357 = vld [vmem:[%s268 + $0x24] sm:$0xf]
        %v358 = vld [vmem:[%s268 + $0x28] sm:$0xf]
        %v359 = vld [vmem:[%s268 + $0x2c] sm:$0xf]
        %v360 = vld [vmem:[%s268 + $0x30] sm:$0xf]
        %v361 = vld [vmem:[%s268 + $0x34] sm:$0xf]
        %v362 = vld [vmem:[%s268 + $0x38] sm:$0xf]
        %v363 = vld [vmem:[%s268 + $0x3c] sm:$0xf]
        %v364 = vld [vmem:[%s2] sm:$0x7]
        %v365 = vunpack.c.l.bf16 %v364
        %v367 = vlaneseq
        %v368 = vshrl.u32 %v367, 7
        %v369 = vsub.s32 0, %v368
        %v370 = vrot.slane %v365, %v369
        %v371 = vlaneseq
        %v372 = vshrl.u32 %v371, 7
        %v373 = vsub.s32 2, %v372
        %v374 = vrot.slane %v365, %v373
        %v375 = vlaneseq
        %v376 = vshrl.u32 %v375, 7
        %v377 = vsub.s32 4, %v376
        %v378 = vrot.slane %v365, %v377
        %v382 = vlaneseq
        %v383 = vshrl.u32 %v382, 7
        %v384 = vsub.s32 0, %v383
        %v385 = vrot.slane %v370, %v384
        %v386 = vlaneseq
        %v387 = vshrl.u32 %v386, 7
        %v388 = vsub.s32 0, %v387
        %v389 = vrot.slane %v374, %v388
        %v390 = vlaneseq
        %v391 = vshrl.u32 %v390, 7
        %v392 = vsub.s32 0, %v391
        %v393 = vrot.slane %v378, %v392
        %v410 = vunpack.c.l.b16 %v348
        %v411 = vunpack.c.l.b16 %v349
        %v412 = vunpack.c.l.b16 %v350
        %v413 = vunpack.c.l.b16 %v351
        %v414 = vunpack.c.l.b16 %v352
        %v415 = vunpack.c.l.b16 %v353
        %v416 = vunpack.c.l.b16 %v354
        %v417 = vunpack.c.l.b16 %v355
        %v418 = vunpack.c.l.b16 %v356
        %v419 = vunpack.c.l.b16 %v357
        %v420 = vunpack.c.l.b16 %v358
        %v421 = vunpack.c.l.b16 %v359
        %v422 = vunpack.c.l.b16 %v360
        %v423 = vunpack.c.l.b16 %v361
        %v424 = vunpack.c.l.b16 %v362
        %v425 = vunpack.c.l.b16 %v363
        %v426 = vpack.c.b16 %v411, %v410
        %v427 = vpack.c.b16 %v413, %v412
        %v428 = vpack.c.b16 %v415, %v414
        %v429 = vpack.c.b16 %v417, %v416
        %v430 = vpack.c.b16 %v419, %v418
        %v431 = vpack.c.b16 %v421, %v420
        %v432 = vpack.c.b16 %v423, %v422
        %v433 = vpack.c.b16 %v425, %v424
        %v474 = vunpack.c.l.b16 %v316
        %v475 = vunpack.c.h.b16 %v316
        %v476 = vunpack.c.l.b16 %v317
        %v477 = vunpack.c.l.b16 %v318
        %v478 = vunpack.c.h.b16 %v318
        %v479 = vunpack.c.l.b16 %v319
        %v480 = vunpack.c.l.b16 %v320
        %v481 = vunpack.c.h.b16 %v320
        %v482 = vunpack.c.l.b16 %v321
        %v483 = vunpack.c.l.b16 %v322
        %v484 = vunpack.c.h.b16 %v322
        %v485 = vunpack.c.l.b16 %v323
        %v486 = vunpack.c.l.b16 %v324
        %v487 = vunpack.c.h.b16 %v324
        %v488 = vunpack.c.l.b16 %v325
        %v489 = vunpack.c.l.b16 %v326
        %v490 = vunpack.c.h.b16 %v326
        %v491 = vunpack.c.l.b16 %v327
        %v492 = vunpack.c.l.b16 %v328
        %v493 = vunpack.c.h.b16 %v328
        %v494 = vunpack.c.l.b16 %v329
        %v495 = vunpack.c.l.b16 %v330
        %v496 = vunpack.c.h.b16 %v330
        %v497 = vunpack.c.l.b16 %v331
        %v498 = vunpack.c.l.b16 %v332
        %v499 = vunpack.c.h.b16 %v332
        %v500 = vunpack.c.l.b16 %v333
        %v501 = vunpack.c.l.b16 %v334
        %v502 = vunpack.c.h.b16 %v334
        %v503 = vunpack.c.l.b16 %v335
        %v504 = vunpack.c.l.b16 %v336
        %v505 = vunpack.c.h.b16 %v336
        %v506 = vunpack.c.l.b16 %v337
        %v507 = vunpack.c.l.b16 %v338
        %v508 = vunpack.c.h.b16 %v338
        %v509 = vunpack.c.l.b16 %v339
        %v510 = vunpack.c.l.b16 %v340
        %v511 = vunpack.c.h.b16 %v340
        %v512 = vunpack.c.l.b16 %v341
        %v513 = vunpack.c.l.b16 %v342
        %v514 = vunpack.c.h.b16 %v342
        %v515 = vunpack.c.l.b16 %v343
        %v516 = vunpack.c.l.b16 %v344
        %v517 = vunpack.c.h.b16 %v344
        %v518 = vunpack.c.l.b16 %v345
        %v519 = vunpack.c.l.b16 %v346
        %v520 = vunpack.c.h.b16 %v346
        %v521 = vunpack.c.l.b16 %v347
        %v522 = vpack.c.b16 %v477, %v474
        %v523 = vpack.c.b16 %v478, %v475
        %v524 = vpack.c.b16 %v479, %v476
        %v525 = vpack.c.b16 %v483, %v480
        %v526 = vpack.c.b16 %v484, %v481
        %v527 = vpack.c.b16 %v485, %v482
        %v528 = vpack.c.b16 %v489, %v486
        %v529 = vpack.c.b16 %v490, %v487
        %v530 = vpack.c.b16 %v491, %v488
        %v531 = vpack.c.b16 %v495, %v492
        %v532 = vpack.c.b16 %v496, %v493
        %v533 = vpack.c.b16 %v497, %v494
        %v534 = vpack.c.b16 %v501, %v498
        %v535 = vpack.c.b16 %v502, %v499
        %v536 = vpack.c.b16 %v503, %v500
        %v537 = vpack.c.b16 %v507, %v504
        %v538 = vpack.c.b16 %v508, %v505
        %v539 = vpack.c.b16 %v509, %v506
        %v540 = vpack.c.b16 %v513, %v510
        %v541 = vpack.c.b16 %v514, %v511
        %v542 = vpack.c.b16 %v515, %v512
        %v543 = vpack.c.b16 %v519, %v516
        %v544 = vpack.c.b16 %v520, %v517
        %v545 = vpack.c.b16 %v521, %v518
        %570 = vmatprep.subr.bf16.mxu0 %v544
        %571 = vmatpush1.bf16.msra.mxu0 %v543
        %572 = vmatprep.subr.bf16.mxu0 %v541
        %573 = vmatpush1.bf16.msra.mxu0 %v540
        %574 = vmatprep.subr.bf16.mxu0 %v538
        %575 = vmatpush1.bf16.msra.mxu0 %v537
        %576 = vmatprep.subr.bf16.mxu0 %v535
        %577 = vmatpush1.bf16.msra.mxu0 %v534
        %578 = vmatprep.subr.bf16.mxu0 %v532
        %579 = vmatpush1.bf16.msra.mxu0 %v531
        %580 = vmatprep.subr.bf16.mxu0 %v529
        %581 = vmatpush1.bf16.msra.mxu0 %v528
        %582 = vmatprep.subr.bf16.mxu0 %v526
        %583 = vmatpush1.bf16.msra.mxu0 %v525
        %584 = vmatprep.subr.bf16.mxu0 %v523
        %585 = vmatpush1.bf16.msra.mxu0 %v522
        %586 = vmatprep.subr.bf16.mxu0 0
        %587 = vmatpush2.bf16.msra.mxu0 0
        %588 = vmatprep.subr.bf16.mxu0 0
        %589 = vmatpush2.bf16.msra.mxu0 0
        %590 = vmatprep.subr.bf16.mxu0 0
        %591 = vmatpush2.bf16.msra.mxu0 0
        %592 = vmatprep.subr.bf16.mxu0 0
        %593 = vmatpush2.bf16.msra.mxu0 0
        %594 = vmatprep.subr.bf16.mxu0 0
        %595 = vmatpush2.bf16.msra.mxu0 0
        %596 = vmatprep.subr.bf16.mxu0 0
        %597 = vmatpush2.bf16.msra.mxu0 0
        %598 = vmatprep.subr.bf16.mxu0 0
        %599 = vmatpush2.bf16.msra.mxu0 0
        %600 = vmatprep.subr.bf16.mxu0 0
        %601 = vmatpush2.bf16.msra.mxu0 0
        %602 = vmatprep.mubr.bf16.mxu0 0
        %603 = vmatmul.mubr.bf16.gmra.mxu0 %v426
        %v604 = vpop.f32.mrf.mxu0
        %v605 = vadd.f32 %v385, %v604
        %v606 = vpop.f32.mrf.mxu0
        %v607 = vadd.f32 %v389, %v606
        %v608 = vpop.f32.mrf.mxu0
        %v609 = vadd.f32 %v385, %v608
        %v610 = vpop.f32.mrf.mxu0
        %v611 = vadd.f32 %v389, %v610
        %612 = vmatprep.mubr.bf16.mxu0 0
        %613 = vmatmul.mubr.bf16.gmra.mxu0 %v427
        %v614 = vpop.f32.mrf.mxu0
        %v615 = vadd.f32 %v385, %v614
        %v616 = vpop.f32.mrf.mxu0
        %v617 = vadd.f32 %v389, %v616
        %v618 = vpop.f32.mrf.mxu0
        %v619 = vadd.f32 %v385, %v618
        %v620 = vpop.f32.mrf.mxu0
        %v621 = vadd.f32 %v389, %v620
        %622 = vmatprep.mubr.bf16.mxu0 0
        %623 = vmatmul.mubr.bf16.gmra.mxu0 %v428
        %v624 = vpop.f32.mrf.mxu0
        %v625 = vadd.f32 %v385, %v624
        %v626 = vpop.f32.mrf.mxu0
        %v627 = vadd.f32 %v389, %v626
        %v628 = vpop.f32.mrf.mxu0
        %v629 = vadd.f32 %v385, %v628
        %v630 = vpop.f32.mrf.mxu0
        %v631 = vadd.f32 %v389, %v630
        %632 = vmatprep.mubr.bf16.mxu0 0
        %633 = vmatmul.mubr.bf16.gmra.mxu0 %v429
        %v634 = vpop.f32.mrf.mxu0
        %v635 = vadd.f32 %v385, %v634
        %v636 = vpop.f32.mrf.mxu0
        %v637 = vadd.f32 %v389, %v636
        %v638 = vpop.f32.mrf.mxu0
        %v639 = vadd.f32 %v385, %v638
        %v640 = vpop.f32.mrf.mxu0
        %v641 = vadd.f32 %v389, %v640
        %642 = vmatprep.mubr.bf16.mxu0 0
        %643 = vmatmul.mubr.bf16.gmra.mxu0 %v430
        %v644 = vpop.f32.mrf.mxu0
        %v645 = vadd.f32 %v385, %v644
        %v646 = vpop.f32.mrf.mxu0
        %v647 = vadd.f32 %v389, %v646
        %v648 = vpop.f32.mrf.mxu0
        %v649 = vadd.f32 %v385, %v648
        %v650 = vpop.f32.mrf.mxu0
        %v651 = vadd.f32 %v389, %v650
        %652 = vmatprep.mubr.bf16.mxu0 0
        %653 = vmatmul.mubr.bf16.gmra.mxu0 %v431
        %v654 = vpop.f32.mrf.mxu0
        %v655 = vadd.f32 %v385, %v654
        %v656 = vpop.f32.mrf.mxu0
        %v657 = vadd.f32 %v389, %v656
        %v658 = vpop.f32.mrf.mxu0
        %v659 = vadd.f32 %v385, %v658
        %v660 = vpop.f32.mrf.mxu0
        %v661 = vadd.f32 %v389, %v660
        %662 = vmatprep.mubr.bf16.mxu0 0
        %663 = vmatmul.mubr.bf16.gmra.mxu0 %v432
        %v664 = vpop.f32.mrf.mxu0
        %v665 = vadd.f32 %v385, %v664
        %v666 = vpop.f32.mrf.mxu0
        %v667 = vadd.f32 %v389, %v666
        %v668 = vpop.f32.mrf.mxu0
        %v669 = vadd.f32 %v385, %v668
        %v670 = vpop.f32.mrf.mxu0
        %v671 = vadd.f32 %v389, %v670
        %672 = vmatprep.mubr.bf16.mxu0 0
        %673 = vmatmul.mubr.bf16.gmra.mxu0 %v433
        %v674 = vpop.f32.mrf.mxu0
        %v675 = vadd.f32 %v385, %v674
        %v676 = vpop.f32.mrf.mxu0
        %v677 = vadd.f32 %v389, %v676
        %v678 = vpop.f32.mrf.mxu0
        %v679 = vadd.f32 %v385, %v678
        %v680 = vpop.f32.mrf.mxu0
        %v681 = vadd.f32 %v389, %v680
        %682 = vdwg.mxu0
        %683 = vmatprep.subr.bf16.mxu0 0
        %684 = vmatpush1.bf16.msra.mxu0 %v545
        %685 = vmatprep.subr.bf16.mxu0 0
        %686 = vmatpush1.bf16.msra.mxu0 %v542
        %687 = vmatprep.subr.bf16.mxu0 0
        %688 = vmatpush1.bf16.msra.mxu0 %v539
        %689 = vmatprep.subr.bf16.mxu0 0
        %690 = vmatpush1.bf16.msra.mxu0 %v536
        %691 = vmatprep.subr.bf16.mxu0 0
        %692 = vmatpush1.bf16.msra.mxu0 %v533
        %693 = vmatprep.subr.bf16.mxu0 0
        %694 = vmatpush1.bf16.msra.mxu0 %v530
        %695 = vmatprep.subr.bf16.mxu0 0
        %696 = vmatpush1.bf16.msra.mxu0 %v527
        %697 = vmatprep.subr.bf16.mxu0 0
        %698 = vmatpush1.bf16.msra.mxu0 %v524
        %699 = vmatprep.subr.bf16.mxu0 0
        %700 = vmatpush2.bf16.msra.mxu0 0
        %701 = vmatprep.subr.bf16.mxu0 0
        %702 = vmatpush2.bf16.msra.mxu0 0
        %703 = vmatprep.subr.bf16.mxu0 0
        %704 = vmatpush2.bf16.msra.mxu0 0
        %705 = vmatprep.subr.bf16.mxu0 0
        %706 = vmatpush2.bf16.msra.mxu0 0
        %707 = vmatprep.subr.bf16.mxu0 0
        %708 = vmatpush2.bf16.msra.mxu0 0
        %709 = vmatprep.subr.bf16.mxu0 0
        %710 = vmatpush2.bf16.msra.mxu0 0
        %711 = vmatprep.subr.bf16.mxu0 0
        %712 = vmatpush2.bf16.msra.mxu0 0
        %713 = vmatprep.subr.bf16.mxu0 0
        %714 = vmatpush2.bf16.msra.mxu0 0
        %715 = vmatprep.mubr.bf16.mxu0 0
        %716 = vmatmul.mubr.bf16.gmra.mxu0 %v426
        %v717 = vpop.f32.mrf.mxu0
        %v718 = vadd.f32 %v393, %v717
        %v719 = vpop.f32.mrf.mxu0
        %v720 = vpop.f32.mrf.mxu0
        %v721 = vadd.f32 %v393, %v720
        %v722 = vpop.f32.mrf.mxu0
        %723 = vmatprep.mubr.bf16.mxu0 0
        %724 = vmatmul.mubr.bf16.gmra.mxu0 %v427
        %v725 = vpop.f32.mrf.mxu0
        %v726 = vadd.f32 %v393, %v725
        %v727 = vpop.f32.mrf.mxu0
        %v728 = vpop.f32.mrf.mxu0
        %v729 = vadd.f32 %v393, %v728
        %v730 = vpop.f32.mrf.mxu0
        %731 = vmatprep.mubr.bf16.mxu0 0
        %732 = vmatmul.mubr.bf16.gmra.mxu0 %v428
        %v733 = vpop.f32.mrf.mxu0
        %v734 = vadd.f32 %v393, %v733
        %v735 = vpop.f32.mrf.mxu0
        %v736 = vpop.f32.mrf.mxu0
        %v737 = vadd.f32 %v393, %v736
        %v738 = vpop.f32.mrf.mxu0
        %739 = vmatprep.mubr.bf16.mxu0 0
        %740 = vmatmul.mubr.bf16.gmra.mxu0 %v429
        %v741 = vpop.f32.mrf.mxu0
        %v742 = vadd.f32 %v393, %v741
        %v743 = vpop.f32.mrf.mxu0
        %v744 = vpop.f32.mrf.mxu0
        %v745 = vadd.f32 %v393, %v744
        %v746 = vpop.f32.mrf.mxu0
        %747 = vmatprep.mubr.bf16.mxu0 0
        %748 = vmatmul.mubr.bf16.gmra.mxu0 %v430
        %v749 = vpop.f32.mrf.mxu0
        %v750 = vadd.f32 %v393, %v749
        %v751 = vpop.f32.mrf.mxu0
        %v752 = vpop.f32.mrf.mxu0
        %v753 = vadd.f32 %v393, %v752
        %v754 = vpop.f32.mrf.mxu0
        %755 = vmatprep.mubr.bf16.mxu0 0
        %756 = vmatmul.mubr.bf16.gmra.mxu0 %v431
        %v757 = vpop.f32.mrf.mxu0
        %v758 = vadd.f32 %v393, %v757
        %v759 = vpop.f32.mrf.mxu0
        %v760 = vpop.f32.mrf.mxu0
        %v761 = vadd.f32 %v393, %v760
        %v762 = vpop.f32.mrf.mxu0
        %763 = vmatprep.mubr.bf16.mxu0 0
        %764 = vmatmul.mubr.bf16.gmra.mxu0 %v432
        %v765 = vpop.f32.mrf.mxu0
        %v766 = vadd.f32 %v393, %v765
        %v767 = vpop.f32.mrf.mxu0
        %v768 = vpop.f32.mrf.mxu0
        %v769 = vadd.f32 %v393, %v768
        %v770 = vpop.f32.mrf.mxu0
        %771 = vmatprep.mubr.bf16.mxu0 0
        %772 = vmatmul.mubr.bf16.gmra.mxu0 %v433
        %v773 = vpop.f32.mrf.mxu0
        %v774 = vadd.f32 %v393, %v773
        %v775 = vpop.f32.mrf.mxu0
        %v776 = vpop.f32.mrf.mxu0
        %v777 = vadd.f32 %v393, %v776
        %v778 = vpop.f32.mrf.mxu0
        %779 = vdwg.mxu0
        %v780 = vmax.f32 %v605, 0.0
        %v781 = vmax.f32 %v607, 0.0
        %v782 = vmax.f32 %v609, 0.0
        %v783 = vmax.f32 %v611, 0.0
        %v784 = vmax.f32 %v615, 0.0
        %v785 = vmax.f32 %v617, 0.0
        %v786 = vmax.f32 %v619, 0.0
        %v787 = vmax.f32 %v621, 0.0
        %v788 = vmax.f32 %v625, 0.0
        %v789 = vmax.f32 %v627, 0.0
        %v790 = vmax.f32 %v629, 0.0
        %v791 = vmax.f32 %v631, 0.0
        %v792 = vmax.f32 %v635, 0.0
        %v793 = vmax.f32 %v637, 0.0
        %v794 = vmax.f32 %v639, 0.0
        %v795 = vmax.f32 %v641, 0.0
        %v796 = vmax.f32 %v645, 0.0
        %v797 = vmax.f32 %v647, 0.0
        %v798 = vmax.f32 %v649, 0.0
        %v799 = vmax.f32 %v651, 0.0
        %v800 = vmax.f32 %v655, 0.0
        %v801 = vmax.f32 %v657, 0.0
        %v802 = vmax.f32 %v659, 0.0
        %v803 = vmax.f32 %v661, 0.0
        %v804 = vmax.f32 %v665, 0.0
        %v805 = vmax.f32 %v667, 0.0
        %v806 = vmax.f32 %v669, 0.0
        %v807 = vmax.f32 %v671, 0.0
        %v808 = vmax.f32 %v675, 0.0
        %v809 = vmax.f32 %v677, 0.0
        %v810 = vmax.f32 %v679, 0.0
        %v811 = vmax.f32 %v681, 0.0
        %v812 = vpack.c.bf16 %v782, %v780
        %v813 = vpack.c.bf16 %v783, %v781
        %v814 = vpack.c.bf16 %v786, %v784
        %v815 = vpack.c.bf16 %v787, %v785
        %v816 = vpack.c.bf16 %v790, %v788
        %v817 = vpack.c.bf16 %v791, %v789
        %v818 = vpack.c.bf16 %v794, %v792
        %v819 = vpack.c.bf16 %v795, %v793
        %v820 = vpack.c.bf16 %v798, %v796
        %v821 = vpack.c.bf16 %v799, %v797
        %v822 = vpack.c.bf16 %v802, %v800
        %v823 = vpack.c.bf16 %v803, %v801
        %v824 = vpack.c.bf16 %v806, %v804
        %v825 = vpack.c.bf16 %v807, %v805
        %v826 = vpack.c.bf16 %v810, %v808
        %v827 = vpack.c.bf16 %v811, %v809
        %v828 = vld [vmem:[#allocation7] sm:$0xf]
        %v829 = vld [vmem:[#allocation7 + $0x4] sm:$0xf]
        %v830 = vld [vmem:[#allocation7 + $0x8] sm:$0xf]
        %v831 = vld [vmem:[#allocation7 + $0xc] sm:$0xf]
        %v832 = vld [vmem:[#allocation7 + $0x10] sm:$0xf]
        %v833 = vld [vmem:[#allocation7 + $0x14] sm:$0xf]
        %v834 = vld [vmem:[#allocation7 + $0x18] sm:$0xf]
        %v835 = vld [vmem:[#allocation7 + $0x1c] sm:$0xf]
        %v836 = vld [vmem:[#allocation7 + $0x20] sm:$0xf]
        %v837 = vld [vmem:[#allocation7 + $0x24] sm:$0xf]
        %v838 = vld [vmem:[#allocation7 + $0x28] sm:$0xf]
        %v839 = vld [vmem:[#allocation7 + $0x2c] sm:$0xf]
        %v840 = vld [vmem:[#allocation7 + $0x30] sm:$0xf]
        %v841 = vld [vmem:[#allocation7 + $0x34] sm:$0xf]
        %v842 = vld [vmem:[#allocation7 + $0x38] sm:$0xf]
        %v843 = vld [vmem:[#allocation7 + $0x3c] sm:$0xf]
        %v844 = vld [vmem:[#allocation7 + $0x40] sm:$0xf]
        %v845 = vld [vmem:[#allocation7 + $0x44] sm:$0xf]
        %v846 = vld [vmem:[#allocation7 + $0x48] sm:$0xf]
        %v847 = vld [vmem:[#allocation7 + $0x4c] sm:$0xf]
        %v848 = vld [vmem:[#allocation7 + $0x50] sm:$0xf]
        %v849 = vld [vmem:[#allocation7 + $0x54] sm:$0xf]
        %v850 = vld [vmem:[#allocation7 + $0x58] sm:$0xf]
        %v851 = vld [vmem:[#allocation7 + $0x5c] sm:$0xf]
        %v852 = vld [vmem:[#allocation7 + $0x60] sm:$0xf]
        %v853 = vld [vmem:[#allocation7 + $0x64] sm:$0xf]
        %v854 = vld [vmem:[#allocation7 + $0x68] sm:$0xf]
        %v855 = vld [vmem:[#allocation7 + $0x6c] sm:$0xf]
        %v856 = vld [vmem:[#allocation7 + $0x70] sm:$0xf]
        %v857 = vld [vmem:[#allocation7 + $0x74] sm:$0xf]
        %v858 = vld [vmem:[#allocation7 + $0x78] sm:$0xf]
        %v859 = vld [vmem:[#allocation7 + $0x7c] sm:$0xf]
        %v892 = vunpack.c.l.b16 %v828
        %v893 = vunpack.c.l.b16 %v829
        %v894 = vunpack.c.l.b16 %v830
        %v895 = vunpack.c.l.b16 %v831
        %v896 = vunpack.c.l.b16 %v832
        %v897 = vunpack.c.l.b16 %v833
        %v898 = vunpack.c.l.b16 %v834
        %v899 = vunpack.c.l.b16 %v835
        %v900 = vunpack.c.l.b16 %v836
        %v901 = vunpack.c.l.b16 %v837
        %v902 = vunpack.c.l.b16 %v838
        %v903 = vunpack.c.l.b16 %v839
        %v904 = vunpack.c.l.b16 %v840
        %v905 = vunpack.c.l.b16 %v841
        %v906 = vunpack.c.l.b16 %v842
        %v907 = vunpack.c.l.b16 %v843
        %v908 = vunpack.c.l.b16 %v844
        %v909 = vunpack.c.l.b16 %v845
        %v910 = vunpack.c.l.b16 %v846
        %v911 = vunpack.c.l.b16 %v847
        %v912 = vunpack.c.l.b16 %v848
        %v913 = vunpack.c.l.b16 %v849
        %v914 = vunpack.c.l.b16 %v850
        %v915 = vunpack.c.l.b16 %v851
        %v916 = vunpack.c.l.b16 %v852
        %v917 = vunpack.c.l.b16 %v853
        %v918 = vunpack.c.l.b16 %v854
        %v919 = vunpack.c.l.b16 %v855
        %v920 = vunpack.c.l.b16 %v856
        %v921 = vunpack.c.l.b16 %v857
        %v922 = vunpack.c.l.b16 %v858
        %v923 = vunpack.c.l.b16 %v859
        %v924 = vpack.c.b16 %v893, %v892
        %v925 = vpack.c.b16 %v895, %v894
        %v926 = vpack.c.b16 %v897, %v896
        %v927 = vpack.c.b16 %v899, %v898
        %v928 = vpack.c.b16 %v901, %v900
        %v929 = vpack.c.b16 %v903, %v902
        %v930 = vpack.c.b16 %v905, %v904
        %v931 = vpack.c.b16 %v907, %v906
        %v932 = vpack.c.b16 %v909, %v908
        %v933 = vpack.c.b16 %v911, %v910
        %v934 = vpack.c.b16 %v913, %v912
        %v935 = vpack.c.b16 %v915, %v914
        %v936 = vpack.c.b16 %v917, %v916
        %v937 = vpack.c.b16 %v919, %v918
        %v938 = vpack.c.b16 %v921, %v920
        %v939 = vpack.c.b16 %v923, %v922
        %956 = vmatprep.subr.bf16.mxu0 0
        %957 = vmatpush1.bf16.msra.mxu0 %v931
        %958 = vmatprep.subr.bf16.mxu0 0
        %959 = vmatpush1.bf16.msra.mxu0 %v930
        %960 = vmatprep.subr.bf16.mxu0 0
        %961 = vmatpush1.bf16.msra.mxu0 %v929
        %962 = vmatprep.subr.bf16.mxu0 0
        %963 = vmatpush1.bf16.msra.mxu0 %v928
        %964 = vmatprep.subr.bf16.mxu0 0
        %965 = vmatpush1.bf16.msra.mxu0 %v927
        %966 = vmatprep.subr.bf16.mxu0 0
        %967 = vmatpush1.bf16.msra.mxu0 %v926
        %968 = vmatprep.subr.bf16.mxu0 0
        %969 = vmatpush1.bf16.msra.mxu0 %v925
        %970 = vmatprep.subr.bf16.mxu0 0
        %971 = vmatpush1.bf16.msra.mxu0 %v924
        %972 = vmatprep.subr.bf16.mxu0 0
        %973 = vmatpush2.bf16.msra.mxu0 %v939
        %974 = vmatprep.subr.bf16.mxu0 0
        %975 = vmatpush2.bf16.msra.mxu0 %v938
        %976 = vmatprep.subr.bf16.mxu0 0
        %977 = vmatpush2.bf16.msra.mxu0 %v937
        %978 = vmatprep.subr.bf16.mxu0 0
        %979 = vmatpush2.bf16.msra.mxu0 %v936
        %980 = vmatprep.subr.bf16.mxu0 0
        %981 = vmatpush2.bf16.msra.mxu0 %v935
        %982 = vmatprep.subr.bf16.mxu0 0
        %983 = vmatpush2.bf16.msra.mxu0 %v934
        %984 = vmatprep.subr.bf16.mxu0 0
        %985 = vmatpush2.bf16.msra.mxu0 %v933
        %986 = vmatprep.subr.bf16.mxu0 0
        %987 = vmatpush2.bf16.msra.mxu0 %v932
        %988 = vmatprep.mubr.bf16.mxu0 %v813
        %989 = vmatmul.mubr.bf16.gmra.mxu0 %v812
        %v990 = vpop.f32.mrf.mxu0
        %v991 = vadd.f32 %v718, %v990
        %v992 = vpop.f32.mrf.mxu0
        %v993 = vpop.f32.mrf.mxu0
        %v994 = vadd.f32 %v721, %v993
        %v995 = vpop.f32.mrf.mxu0
        %996 = vmatprep.mubr.bf16.mxu0 %v815
        %997 = vmatmul.mubr.bf16.gmra.mxu0 %v814
        %v998 = vpop.f32.mrf.mxu0
        %v999 = vadd.f32 %v726, %v998
        %v1000 = vpop.f32.mrf.mxu0
        %v1001 = vpop.f32.mrf.mxu0
        %v1002 = vadd.f32 %v729, %v1001
        %v1003 = vpop.f32.mrf.mxu0
        %1004 = vmatprep.mubr.bf16.mxu0 %v817
        %1005 = vmatmul.mubr.bf16.gmra.mxu0 %v816
        %v1006 = vpop.f32.mrf.mxu0
        %v1007 = vadd.f32 %v734, %v1006
        %v1008 = vpop.f32.mrf.mxu0
        %v1009 = vpop.f32.mrf.mxu0
        %v1010 = vadd.f32 %v737, %v1009
        %v1011 = vpop.f32.mrf.mxu0
        %1012 = vmatprep.mubr.bf16.mxu0 %v819
        %1013 = vmatmul.mubr.bf16.gmra.mxu0 %v818
        %v1014 = vpop.f32.mrf.mxu0
        %v1015 = vadd.f32 %v742, %v1014
        %v1016 = vpop.f32.mrf.mxu0
        %v1017 = vpop.f32.mrf.mxu0
        %v1018 = vadd.f32 %v745, %v1017
        %v1019 = vpop.f32.mrf.mxu0
        %1020 = vmatprep.mubr.bf16.mxu0 %v821
        %1021 = vmatmul.mubr.bf16.gmra.mxu0 %v820
        %v1022 = vpop.f32.mrf.mxu0
        %v1023 = vadd.f32 %v750, %v1022
        %v1024 = vpop.f32.mrf.mxu0
        %v1025 = vpop.f32.mrf.mxu0
        %v1026 = vadd.f32 %v753, %v1025
        %v1027 = vpop.f32.mrf.mxu0
        %1028 = vmatprep.mubr.bf16.mxu0 %v823
        %1029 = vmatmul.mubr.bf16.gmra.mxu0 %v822
        %v1030 = vpop.f32.mrf.mxu0
        %v1031 = vadd.f32 %v758, %v1030
        %v1032 = vpop.f32.mrf.mxu0
        %v1033 = vpop.f32.mrf.mxu0
        %v1034 = vadd.f32 %v761, %v1033
        %v1035 = vpop.f32.mrf.mxu0
        %1036 = vmatprep.mubr.bf16.mxu0 %v825
        %1037 = vmatmul.mubr.bf16.gmra.mxu0 %v824
        %v1038 = vpop.f32.mrf.mxu0
        %v1039 = vadd.f32 %v766, %v1038
        %v1040 = vpop.f32.mrf.mxu0
        %v1041 = vpop.f32.mrf.mxu0
        %v1042 = vadd.f32 %v769, %v1041
        %v1043 = vpop.f32.mrf.mxu0
        %1044 = vmatprep.mubr.bf16.mxu0 %v827
        %1045 = vmatmul.mubr.bf16.gmra.mxu0 %v826
        %v1046 = vpop.f32.mrf.mxu0
        %v1047 = vadd.f32 %v774, %v1046
        %v1048 = vpop.f32.mrf.mxu0
        %v1049 = vpop.f32.mrf.mxu0
        %v1050 = vadd.f32 %v777, %v1049
        %v1051 = vpop.f32.mrf.mxu0
        %1052 = vdwg.mxu0
        %1053 = vadd.xlane.f32.xlu0 %v991
        %v1054 = vpop.xlane.xlu0 %1053
        %1055 = vadd.xlane.f32.xlu0 %v994
        %v1056 = vpop.xlane.xlu0 %1055
        %1057 = vadd.xlane.f32.xlu0 %v999
        %v1058 = vpop.xlane.xlu0 %1057
        %1059 = vadd.xlane.f32.xlu0 %v1002
        %v1060 = vpop.xlane.xlu0 %1059
        %1061 = vadd.xlane.f32.xlu0 %v1007
        %v1062 = vpop.xlane.xlu0 %1061
        %1063 = vadd.xlane.f32.xlu0 %v1010
        %v1064 = vpop.xlane.xlu0 %1063
        %1065 = vadd.xlane.f32.xlu0 %v1015
        %v1066 = vpop.xlane.xlu0 %1065
        %1067 = vadd.xlane.f32.xlu0 %v1018
        %v1068 = vpop.xlane.xlu0 %1067
        %1069 = vadd.xlane.f32.xlu0 %v1023
        %v1070 = vpop.xlane.xlu0 %1069
        %1071 = vadd.xlane.f32.xlu0 %v1026
        %v1072 = vpop.xlane.xlu0 %1071
        %1073 = vadd.xlane.f32.xlu0 %v1031
        %v1074 = vpop.xlane.xlu0 %1073
        %1075 = vadd.xlane.f32.xlu0 %v1034
        %v1076 = vpop.xlane.xlu0 %1075
        %1077 = vadd.xlane.f32.xlu0 %v1039
        %v1078 = vpop.xlane.xlu0 %1077
        %1079 = vadd.xlane.f32.xlu0 %v1042
        %v1080 = vpop.xlane.xlu0 %1079
        %1081 = vadd.xlane.f32.xlu0 %v1047
        %v1082 = vpop.xlane.xlu0 %1081
        %1083 = vadd.xlane.f32.xlu0 %v1050
        %v1084 = vpop.xlane.xlu0 %1083
        %v1085 = vrcp.pop 128.0
        %v1086 = vmul.f32 %v1054, %v1085
        %v1087 = vmul.f32 %v1056, %v1085
        %v1088 = vmul.f32 %v1058, %v1085
        %v1089 = vmul.f32 %v1060, %v1085
        %v1090 = vmul.f32 %v1062, %v1085
        %v1091 = vmul.f32 %v1064, %v1085
        %v1092 = vmul.f32 %v1066, %v1085
        %v1093 = vmul.f32 %v1068, %v1085
        %v1094 = vmul.f32 %v1070, %v1085
        %v1095 = vmul.f32 %v1072, %v1085
        %v1096 = vmul.f32 %v1074, %v1085
        %v1097 = vmul.f32 %v1076, %v1085
        %v1098 = vmul.f32 %v1078, %v1085
        %v1099 = vmul.f32 %v1080, %v1085
        %v1100 = vmul.f32 %v1082, %v1085
        %v1101 = vmul.f32 %v1084, %v1085
        %v1102 = vsub.f32 %v991, %v1086
        %v1103 = vsub.f32 %v994, %v1087
        %v1104 = vsub.f32 %v999, %v1088
        %v1105 = vsub.f32 %v1002, %v1089
        %v1106 = vsub.f32 %v1007, %v1090
        %v1107 = vsub.f32 %v1010, %v1091
        %v1108 = vsub.f32 %v1015, %v1092
        %v1109 = vsub.f32 %v1018, %v1093
        %v1110 = vsub.f32 %v1023, %v1094
        %v1111 = vsub.f32 %v1026, %v1095
        %v1112 = vsub.f32 %v1031, %v1096
        %v1113 = vsub.f32 %v1034, %v1097
        %v1114 = vsub.f32 %v1039, %v1098
        %v1115 = vsub.f32 %v1042, %v1099
        %v1116 = vsub.f32 %v1047, %v1100
        %v1117 = vsub.f32 %v1050, %v1101
        %v1118 = vmul.f32 %v1102, %v1102
        %v1119 = vmul.f32 %v1103, %v1103
        %v1120 = vmul.f32 %v1104, %v1104
        %v1121 = vmul.f32 %v1105, %v1105
        %v1122 = vmul.f32 %v1106, %v1106
        %v1123 = vmul.f32 %v1107, %v1107
        %v1124 = vmul.f32 %v1108, %v1108
        %v1125 = vmul.f32 %v1109, %v1109
        %v1126 = vmul.f32 %v1110, %v1110
        %v1127 = vmul.f32 %v1111, %v1111
        %v1128 = vmul.f32 %v1112, %v1112
        %v1129 = vmul.f32 %v1113, %v1113
        %v1130 = vmul.f32 %v1114, %v1114
        %v1131 = vmul.f32 %v1115, %v1115
        %v1132 = vmul.f32 %v1116, %v1116
        %v1133 = vmul.f32 %v1117, %v1117
        %1134 = vadd.xlane.f32.xlu0 %v1118
        %v1135 = vpop.xlane.xlu0 %1134
        %1136 = vadd.xlane.f32.xlu0 %v1119
        %v1137 = vpop.xlane.xlu0 %1136
        %1138 = vadd.xlane.f32.xlu0 %v1120
        %v1139 = vpop.xlane.xlu0 %1138
        %1140 = vadd.xlane.f32.xlu0 %v1121
        %v1141 = vpop.xlane.xlu0 %1140
        %1142 = vadd.xlane.f32.xlu0 %v1122
        %v1143 = vpop.xlane.xlu0 %1142
        %1144 = vadd.xlane.f32.xlu0 %v1123
        %v1145 = vpop.xlane.xlu0 %1144
        %1146 = vadd.xlane.f32.xlu0 %v1124
        %v1147 = vpop.xlane.xlu0 %1146
        %1148 = vadd.xlane.f32.xlu0 %v1125
        %v1149 = vpop.xlane.xlu0 %1148
        %1150 = vadd.xlane.f32.xlu0 %v1126
        %v1151 = vpop.xlane.xlu0 %1150
        %1152 = vadd.xlane.f32.xlu0 %v1127
        %v1153 = vpop.xlane.xlu0 %1152
        %1154 = vadd.xlane.f32.xlu0 %v1128
        %v1155 = vpop.xlane.xlu0 %1154
        %1156 = vadd.xlane.f32.xlu0 %v1129
        %v1157 = vpop.xlane.xlu0 %1156
        %1158 = vadd.xlane.f32.xlu0 %v1130
        %v1159 = vpop.xlane.xlu0 %1158
        %1160 = vadd.xlane.f32.xlu0 %v1131
        %v1161 = vpop.xlane.xlu0 %1160
        %1162 = vadd.xlane.f32.xlu0 %v1132
        %v1163 = vpop.xlane.xlu0 %1162
        %1164 = vadd.xlane.f32.xlu0 %v1133
        %v1165 = vpop.xlane.xlu0 %1164
        %v1166 = vmul.f32 %v1135, %v1085
        %v1167 = vmul.f32 %v1137, %v1085
        %v1168 = vmul.f32 %v1139, %v1085
        %v1169 = vmul.f32 %v1141, %v1085
        %v1170 = vmul.f32 %v1143, %v1085
        %v1171 = vmul.f32 %v1145, %v1085
        %v1172 = vmul.f32 %v1147, %v1085
        %v1173 = vmul.f32 %v1149, %v1085
        %v1174 = vmul.f32 %v1151, %v1085
        %v1175 = vmul.f32 %v1153, %v1085
        %v1176 = vmul.f32 %v1155, %v1085
        %v1177 = vmul.f32 %v1157, %v1085
        %v1178 = vmul.f32 %v1159, %v1085
        %v1179 = vmul.f32 %v1161, %v1085
        %v1180 = vmul.f32 %v1163, %v1085
        %v1181 = vmul.f32 %v1165, %v1085
        %v1182 = vadd.f32 %v1166, 1e-05
        %v1183 = vadd.f32 %v1167, 1e-05
        %v1184 = vadd.f32 %v1168, 1e-05
        %v1185 = vadd.f32 %v1169, 1e-05
        %v1186 = vadd.f32 %v1170, 1e-05
        %v1187 = vadd.f32 %v1171, 1e-05
        %v1188 = vadd.f32 %v1172, 1e-05
        %v1189 = vadd.f32 %v1173, 1e-05
        %v1190 = vadd.f32 %v1174, 1e-05
        %v1191 = vadd.f32 %v1175, 1e-05
        %v1192 = vadd.f32 %v1176, 1e-05
        %v1193 = vadd.f32 %v1177, 1e-05
        %v1194 = vadd.f32 %v1178, 1e-05
        %v1195 = vadd.f32 %v1179, 1e-05
        %v1196 = vadd.f32 %v1180, 1e-05
        %v1197 = vadd.f32 %v1181, 1e-05
        %v1198 = vrsqrt.pop %v1182
        %v1199 = vrsqrt.pop %v1183
        %v1200 = vrsqrt.pop %v1184
        %v1201 = vrsqrt.pop %v1185
        %v1202 = vrsqrt.pop %v1186
        %v1203 = vrsqrt.pop %v1187
        %v1204 = vrsqrt.pop %v1188
        %v1205 = vrsqrt.pop %v1189
        %v1206 = vrsqrt.pop %v1190
        %v1207 = vrsqrt.pop %v1191
        %v1208 = vrsqrt.pop %v1192
        %v1209 = vrsqrt.pop %v1193
        %v1210 = vrsqrt.pop %v1194
        %v1211 = vrsqrt.pop %v1195
        %v1212 = vrsqrt.pop %v1196
        %v1213 = vrsqrt.pop %v1197
        %v1214 = vmul.f32 %v1102, %v1198
        %v1215 = vmul.f32 %v1103, %v1199
        %v1216 = vmul.f32 %v1104, %v1200
        %v1217 = vmul.f32 %v1105, %v1201
        %v1218 = vmul.f32 %v1106, %v1202
        %v1219 = vmul.f32 %v1107, %v1203
        %v1220 = vmul.f32 %v1108, %v1204
        %v1221 = vmul.f32 %v1109, %v1205
        %v1222 = vmul.f32 %v1110, %v1206
        %v1223 = vmul.f32 %v1111, %v1207
        %v1224 = vmul.f32 %v1112, %v1208
        %v1225 = vmul.f32 %v1113, %v1209
        %v1226 = vmul.f32 %v1114, %v1210
        %v1227 = vmul.f32 %v1115, %v1211
        %v1228 = vmul.f32 %v1116, %v1212
        %v1229 = vmul.f32 %v1117, %v1213
        %v1230 = vld [vmem:[%s4] sm:$0x1]
        %v1231 = vunpack.c.l.bf16 %v1230
        %v1232 = vlaneseq
        %v1233 = vshrl.u32 %v1232, 7
        %v1234 = vsub.s32 0, %v1233
        %v1235 = vrot.slane %v1231, %v1234
        %v1236 = vmul.f32 %v1214, %v1235
        %v1237 = vmul.f32 %v1215, %v1235
        %v1238 = vmul.f32 %v1216, %v1235
        %v1239 = vmul.f32 %v1217, %v1235
        %v1240 = vmul.f32 %v1218, %v1235
        %v1241 = vmul.f32 %v1219, %v1235
        %v1242 = vmul.f32 %v1220, %v1235
        %v1243 = vmul.f32 %v1221, %v1235
        %v1244 = vmul.f32 %v1222, %v1235
        %v1245 = vmul.f32 %v1223, %v1235
        %v1246 = vmul.f32 %v1224, %v1235
        %v1247 = vmul.f32 %v1225, %v1235
        %v1248 = vmul.f32 %v1226, %v1235
        %v1249 = vmul.f32 %v1227, %v1235
        %v1250 = vmul.f32 %v1228, %v1235
        %v1251 = vmul.f32 %v1229, %v1235
        %v1252 = vld [vmem:[%s5] sm:$0x1]
        %v1253 = vunpack.c.l.bf16 %v1252
        %v1254 = vlaneseq
        %v1255 = vshrl.u32 %v1254, 7
        %v1256 = vsub.s32 0, %v1255
        %v1257 = vrot.slane %v1253, %v1256
        %v1258 = vadd.f32 %v1236, %v1257
        %v1259 = vadd.f32 %v1237, %v1257
        %v1260 = vadd.f32 %v1238, %v1257
        %v1261 = vadd.f32 %v1239, %v1257
        %v1262 = vadd.f32 %v1240, %v1257
        %v1263 = vadd.f32 %v1241, %v1257
        %v1264 = vadd.f32 %v1242, %v1257
        %v1265 = vadd.f32 %v1243, %v1257
        %v1266 = vadd.f32 %v1244, %v1257
        %v1267 = vadd.f32 %v1245, %v1257
        %v1268 = vadd.f32 %v1246, %v1257
        %v1269 = vadd.f32 %v1247, %v1257
        %v1270 = vadd.f32 %v1248, %v1257
        %v1271 = vadd.f32 %v1249, %v1257
        %v1272 = vadd.f32 %v1250, %v1257
        %v1273 = vadd.f32 %v1251, %v1257
        %v1274 = vpack.c.bf16 %v1259, %v1258
        %v1275 = vpack.c.bf16 %v1261, %v1260
        %v1276 = vpack.c.bf16 %v1263, %v1262
        %v1277 = vpack.c.bf16 %v1265, %v1264
        %v1278 = vpack.c.bf16 %v1267, %v1266
        %v1279 = vpack.c.bf16 %v1269, %v1268
        %v1280 = vpack.c.bf16 %v1271, %v1270
        %v1281 = vpack.c.bf16 %v1273, %v1272
        %v1290 = vunpack.c.l.b16 %v1274
        %v1291 = vunpack.c.h.b16 %v1274
        %v1292 = vunpack.c.l.b16 %v1275
        %v1293 = vunpack.c.h.b16 %v1275
        %v1294 = vunpack.c.l.b16 %v1276
        %v1295 = vunpack.c.h.b16 %v1276
        %v1296 = vunpack.c.l.b16 %v1277
        %v1297 = vunpack.c.h.b16 %v1277
        %v1298 = vunpack.c.l.b16 %v1278
        %v1299 = vunpack.c.h.b16 %v1278
        %v1300 = vunpack.c.l.b16 %v1279
        %v1301 = vunpack.c.h.b16 %v1279
        %v1302 = vunpack.c.l.b16 %v1280
        %v1303 = vunpack.c.h.b16 %v1280
        %v1304 = vunpack.c.l.b16 %v1281
        %v1305 = vunpack.c.h.b16 %v1281
        %v1306 = vpack.c.b16 %v1290, %v1290
        %v1307 = vpack.c.b16 %v1291, %v1291
        %v1308 = vpack.c.b16 %v1292, %v1292
        %v1309 = vpack.c.b16 %v1293, %v1293
        %v1310 = vpack.c.b16 %v1294, %v1294
        %v1311 = vpack.c.b16 %v1295, %v1295
        %v1312 = vpack.c.b16 %v1296, %v1296
        %v1313 = vpack.c.b16 %v1297, %v1297
        %v1314 = vpack.c.b16 %v1298, %v1298
        %v1315 = vpack.c.b16 %v1299, %v1299
        %v1316 = vpack.c.b16 %v1300, %v1300
        %v1317 = vpack.c.b16 %v1301, %v1301
        %v1318 = vpack.c.b16 %v1302, %v1302
        %v1319 = vpack.c.b16 %v1303, %v1303
        %v1320 = vpack.c.b16 %v1304, %v1304
        %v1321 = vpack.c.b16 %v1305, %v1305
        %1338 = vst [vmem:[%s304] sm:$0xf] %v1306
        %1339 = vst [vmem:[%s304 + $0x4] sm:$0xf] %v1307
        %1340 = vst [vmem:[%s304 + $0x8] sm:$0xf] %v1308
        %1341 = vst [vmem:[%s304 + $0xc] sm:$0xf] %v1309
        %1342 = vst [vmem:[%s304 + $0x10] sm:$0xf] %v1310
        %1343 = vst [vmem:[%s304 + $0x14] sm:$0xf] %v1311
        %1344 = vst [vmem:[%s304 + $0x18] sm:$0xf] %v1312
        %1345 = vst [vmem:[%s304 + $0x1c] sm:$0xf] %v1313
        %1346 = vst [vmem:[%s304 + $0x20] sm:$0xf] %v1314
        %1347 = vst [vmem:[%s304 + $0x24] sm:$0xf] %v1315
        %1348 = vst [vmem:[%s304 + $0x28] sm:$0xf] %v1316
        %1349 = vst [vmem:[%s304 + $0x2c] sm:$0xf] %v1317
        %1350 = vst [vmem:[%s304 + $0x30] sm:$0xf] %v1318
        %1351 = vst [vmem:[%s304 + $0x34] sm:$0xf] %v1319
        %1352 = vst [vmem:[%s304 + $0x38] sm:$0xf] %v1320
        %1353 = vst [vmem:[%s304 + $0x3c] sm:$0xf] %v1321
        %s1354 = sand.u32 %s163, 1
        %s1355 = scalar_lea.sflag [#allocation4], %s1354
        %s1356 = sand.u32 %s163, 1
        %s1357 = smul.addr %s1356, 64
        %s1358 = scalar_lea.vmem [#allocation8], %s1357
        // Predicated region
        $region57: #{tpu_custom_call.1} parent=43 // pred_check
          %p1359 = pneg %p173
        $region58: #{tpu_custom_call.1} parent=43 // pred_check_branch
          %1361 = sbr.rel (%p1359) target = $region60
        $region59: #{tpu_custom_call.1} parent=43 // pred_region
          %s1362 = smul.u32 16, %s24
          %s1363 = ssub.s32 25, %s1362
          %p1364 = scmp.lt.s32.totalorder %s1363, 16
          %s1365 = scalar_select %p1364, %s1363, 16
          %s1366 = smul.u32 64, %s1365
          %s1368 = ssub.s32 1024, %s1366
          %1369 = vsyncadd %s1355, %s1368
          %p1370 = scmp.ne.s32.totalorder 0, %s1366
          %s1371 = smul.addr %s1362, 64
          %s1372 = scalar_lea.hbm %s6, %s1371
          %s1373 = smul.u32 4, %s1365
          %s1374 = sshll.u32 %s1358, 4
          %s1375 = int_to_ptr.vmem [resolvable:$true] %s1374
          %s1376 = sshll.u32 %s1373, 4
          %1380 = dma.vmem_to_hbm [thread:$0]  (%p1370), %s1375, %s1376, %s1372, %s1355, 64, 64, 4
        $region60: #{tpu_custom_call.1} parent=43 // pred_fallthru
          _
      $region44: #{tpu_custom_call.1} parent=5 // pred_fallthru
        _
      %p1381 = scmp.le.s32.totalorder 2, %s19
      // Predicated region
      $region61: #{tpu_custom_call.1} parent=5 // pred_check
        %p1382 = pneg %p1381
      $region62: #{tpu_custom_call.1} parent=5 // pred_check_branch
        %1384 = sbr.rel (%p1382) target = $region64
      $region63: #{tpu_custom_call.1} parent=5 // pred_region
        %s1385 = ssub.s32 %s19, 2
        // Predicated region
        $region65: #{tpu_custom_call.1} parent=63 // pred_check
          %p1386 = pneg %p179
        $region66: #{tpu_custom_call.1} parent=63 // pred_check_branch
          %1388 = sbr.rel (%p1386) target = $region68
        $region67: #{tpu_custom_call.1} parent=63 // pred_region
          %s1389 = sand.u32 %s164, 1
          %s1390 = scalar_lea.sflag [#allocation4], %s1389
          %s1391 = sand.u32 %s164, 1
          %s1392 = smul.addr %s1391, 64
          %s1393 = scalar_lea.vmem [#allocation8], %s1392
          %1394 = dma.done %s1390, 1024
        $region68: #{tpu_custom_call.1} parent=63 // pred_fallthru
          _
      $region64: #{tpu_custom_call.1} parent=5 // pred_fallthru
        _
    $region6: #{tpu_custom_call.1} parent=1 // loop_footer
      %s23 = sadd.s32 1, %s19
    $region7: #{tpu_custom_call.1} parent=1 // loop_footer_branch
      %18 = sbr.rel target = $region3
    $region8: #{tpu_custom_call.1} parent=1 // loop_exit
      _
    %1395 = vsyncpa [#allocation3], 1
    %s1396 = scalar_lea.sflag [#allocation3], 1
    %1397 = vsyncpa %s1396, 1
    %1398 = vsyncpa [#allocation6], 1
    %1399 = vsyncpa [#allocation4], 1
    %s1400 = scalar_lea.sflag [#allocation4], 1
    %1401 = vsyncpa %s1400, 1

</llo_original>
